<compile_context>
chip_gen: v7x
topology: tpu7x:2x2x1
jax: 0.10.0
libtpu: 0.0.40
codegen_flags: <defaults>
</compile_context>

<pallas_src>
import functools

import jax
import jax.numpy as jnp
from jax.experimental import pallas as pl
from jax.experimental.pallas import tpu as pltpu


def _round_up(v, m):
    return (v + m - 1) // m * m


def _vmem_capacity_bytes():
    try:
        return int(pltpu.get_tpu_info().vmem_capacity_bytes)
    except Exception:
        return 64 * 1024 * 1024   # conservative fallback (v7x per-core VMEM)


def _choose_tiling(S, Dp, Hp, resident_w_bytes, streamed_w_bytes, fit_budget):
    """Pick (seq_tile, weights_resident): prefer resident weights, biggest tile."""
    ts = min(512, _round_up(max(S, 1), 8))
    cands = []
    while True:
        cands.append(ts)
        if ts <= 8:
            break
        nxt = _round_up(ts // 2, 8)
        if nxt >= ts:
            break
        ts = nxt

    def act_bytes(t):
        # double-buffered x / cond / out tiles + mask column + temb row
        # + (t, Hp) f32 intermediate + 1 MiB misc headroom.
        return (2 * 4 * (3 * t * Dp + t * 128 + Dp)
                + 4 * t * Hp + (1 << 20))

    streamed_pick = None
    for t in cands:
        if act_bytes(t) + 2 * resident_w_bytes <= fit_budget:
            return t, True
        if streamed_pick is None and act_bytes(t) + 2 * streamed_w_bytes <= fit_budget:
            streamed_pick = t
    if streamed_pick is not None:
        return streamed_pick, False
    # TODO(synk): add an Hp-tiled third weight axis (accumulate the 2nd GEMM in
    # VMEM scratch) for D*H so large that even one block's weights miss VMEM.
    return cands[-1], False


def _block_kernel(x_ref, cond_ref, temb_ref, mask_ref,
                  w1_ref, b1_ref, w2_ref, b2_ref, o_ref,
                  *, weights_resident, mxu_dtype):
    """Grid = (B [parallel], seq_tiles [parallel], n_blocks [arbitrary, inner]).

    The output tile is VMEM-resident across the inner block axis (same output
    block index for every kb), so the activation threads through all blocks
    without touching HBM.
    """
    kb = pl.program_id(2)

    @pl.when(kb == 0)
    def _seed():
        o_ref[...] = x_ref[...]          # seed the resident accumulator

    if weights_resident:
        # Whole weight stack is VMEM-resident; pick this block's slice.
        w1, b1 = w1_ref[kb], b1_ref[kb]
        w2, b2 = w2_ref[kb], b2_ref[kb]
    else:
        w1, b1 = w1_ref[...], b1_ref[...]
        w2, b2 = w2_ref[...], b2_ref[...]

    x = o_ref[...]                        # (TS, Dp): result of previous block
    h = x + cond_ref[...] + temb_ref[...]  # temb (1, Dp) broadcasts over rows

    h1 = jnp.dot(h.astype(mxu_dtype), w1, preferred_element_type=jnp.float32) + b1
    h1 = jnp.maximum(h1, 0.0)
    out = jnp.dot(h1.astype(mxu_dtype), w2, preferred_element_type=jnp.float32) + b2

    # mask streamed as a 128-lane column; lane-broadcast rides the idle XLU/VPU.
    o_ref[...] = x + out * mask_ref[:, 0:1]


def prepare_block_params(block_params, *, mxu_dtype=jnp.float32):
    """Stack + lane-pad per-block weights ONCE (call outside the step function)."""
    wt = jnp.stack([p["wt"] for p in block_params])   # (n, Dt, D)
    bt = jnp.stack([p["bt"] for p in block_params])   # (n, 1,  D)
    w1 = jnp.stack([p["w1"] for p in block_params])   # (n, D,  H)
    b1 = jnp.stack([p["b1"] for p in block_params])   # (n, 1,  H)
    w2 = jnp.stack([p["w2"] for p in block_params])   # (n, H,  D)
    b2 = jnp.stack([p["b2"] for p in block_params])   # (n, 1,  D)
    n, _, D = wt.shape
    H = w1.shape[-1]
    Dp = _round_up(D, 128)
    Hp = _round_up(H, 128)
    pd, ph = Dp - D, Hp - H
    return {
        "n_blocks": n, "D": D, "H": H, "Dp": Dp, "Hp": Hp, "mxu_dtype": mxu_dtype,
        # Hoisted M=1 time projection weights, padded along D so temb is born
        # lane-padded (stays f32 — tiny).
        "wt": jnp.pad(wt, ((0, 0), (0, 0), (0, pd))),
        "bt": jnp.pad(bt, ((0, 0), (0, 0), (0, pd))),
        # MXU operands (bf16 opt-in on v6e/v7x); biases stay f32 (epilogue f32).
        "w1": jnp.pad(w1, ((0, 0), (0, pd), (0, ph))).astype(mxu_dtype),
        "b1": jnp.pad(b1, ((0, 0), (0, 0), (0, ph))),
        "w2": jnp.pad(w2, ((0, 0), (0, ph), (0, pd))).astype(mxu_dtype),
        "b2": jnp.pad(b2, ((0, 0), (0, 0), (0, pd))),
    }


def sequence_with_time_embedding(x, t, cond, mask, params):
    """Pallas equivalent of SequenceWithTimeEmbedding.forward (all blocks fused)."""
    B, S, D = x.shape
    n_blocks, Dp, Hp = params["n_blocks"], params["Dp"], params["Hp"]
    mxu_dtype = params["mxu_dtype"]
    assert D == params["D"]
    assert mask.shape == (B, S, 1)

    # Hoist the M=1 time-embedding projection out of the kernel: tiny GEMM.
    temb = jnp.einsum("bd,ndk->nbk", t, params["wt"]) + params["bt"]   # (n, B, Dp)
    temb = temb.reshape(n_blocks, B, 1, Dp)

    # Generation-aware VMEM budget (128 MiB v5e/v6e, 64 MiB v7x) + fit check.
    capacity = _vmem_capacity_bytes()
    vmem_limit = int(0.85 * capacity)
    fit_budget = int(0.70 * capacity)
    w_item = jnp.finfo(mxu_dtype).bits // 8
    resident_w_bytes = n_blocks * ((Dp * Hp + Hp * Dp) * w_item + (Hp + Dp) * 4)
    streamed_w_bytes = (Dp * Hp + Hp * Dp) * w_item + (Hp + Dp) * 4
    TS, weights_resident = _choose_tiling(S, Dp, Hp, resident_w_bytes,
                                          streamed_w_bytes, fit_budget)

    S_pad = _round_up(S, TS)
    n_seq_tiles = S_pad // TS

    needs_act_pad = (S_pad != S) or (Dp != D)
    if needs_act_pad:
        x_p = jnp.pad(x, ((0, 0), (0, S_pad - S), (0, Dp - D)))
        cond_p = jnp.pad(cond, ((0, 0), (0, S_pad - S), (0, Dp - D)))
    else:
        x_p, cond_p = x, cond
    # Mask: (B, S, 1) -> (B, S_pad, 128); only lane 0 is read in the kernel.
    mask_p = jnp.pad(mask.astype(x.dtype), ((0, 0), (0, S_pad - S), (0, 127)))

    w1_p, b1_p, w2_p, b2_p = params["w1"], params["b1"], params["w2"], params["b2"]

    if weights_resident:
        # Whole stack resident in VMEM for the entire kernel (constant index).
        w1_spec = pl.BlockSpec((n_blocks, Dp, Hp), lambda b, j, kb: (0, 0, 0))
        b1_spec = pl.BlockSpec((n_blocks, 1, Hp),  lambda b, j, kb: (0, 0, 0))
        w2_spec = pl.BlockSpec((n_blocks, Hp, Dp), lambda b, j, kb: (0, 0, 0))
        b2_spec = pl.BlockSpec((n_blocks, 1, Dp),  lambda b, j, kb: (0, 0, 0))
    else:
        w1_spec = pl.BlockSpec((pl.Squeezed(), Dp, Hp), lambda b, j, kb: (kb, 0, 0))
        b1_spec = pl.BlockSpec((pl.Squeezed(), 1, Hp),  lambda b, j, kb: (kb, 0, 0))
        w2_spec = pl.BlockSpec((pl.Squeezed(), Hp, Dp), lambda b, j, kb: (kb, 0, 0))
        b2_spec = pl.BlockSpec((pl.Squeezed(), 1, Dp),  lambda b, j, kb: (kb, 0, 0))

    flops = 4 * n_blocks * B * S_pad * Dp * Hp
    act_io = 4 * (3 * B * S_pad * Dp + B * S_pad * 128) + 4 * n_blocks * B * Dp
    w_io = resident_w_bytes if weights_resident else resident_w_bytes * B * n_seq_tiles
    bytes_accessed = act_io + w_io

    kernel = functools.partial(_block_kernel,
                               weights_resident=weights_resident,
                               mxu_dtype=mxu_dtype)

    out_p = pl.pallas_call(
        kernel,
        out_shape=jax.ShapeDtypeStruct((B, S_pad, Dp), x.dtype),
        grid_spec=pltpu.PrefetchScalarGridSpec(
            num_scalar_prefetch=0,
            grid=(B, n_seq_tiles, n_blocks),
            in_specs=[
                pl.BlockSpec((pl.Squeezed(), TS, Dp),  lambda b, j, kb: (b, j, 0)),   # x
                pl.BlockSpec((pl.Squeezed(), TS, Dp),  lambda b, j, kb: (b, j, 0)),   # cond (kb-invariant)
                pl.BlockSpec((pl.Squeezed(), pl.Squeezed(), 1, Dp),
                             lambda b, j, kb: (kb, b, 0, 0)),                          # temb row
                pl.BlockSpec((pl.Squeezed(), TS, 128), lambda b, j, kb: (b, j, 0)),   # mask column
                w1_spec, b1_spec, w2_spec, b2_spec,
            ],
            out_specs=pl.BlockSpec((pl.Squeezed(), TS, Dp), lambda b, j, kb: (b, j, 0)),
        ),
        compiler_params=pltpu.CompilerParams(
            dimension_semantics=("parallel", "parallel", "arbitrary"),
            vmem_limit_bytes=vmem_limit),
        cost_estimate=pl.CostEstimate(flops=flops, transcendentals=0,
                                      bytes_accessed=bytes_accessed),
        # Alias x to the output only when x_p is a fresh (padded) buffer.
        input_output_aliases=({0: 0} if needs_act_pad else {}),
    )(x_p, cond_p, temb, mask_p, w1_p, b1_p, w2_p, b2_p)

    if needs_act_pad:
        out_p = out_p[:, :S, :D]
    return out_p


def init_block_params(key, Dt, D, H):
    ks = jax.random.split(key, 3)
    return {
        "wt": jax.random.normal(ks[0], (Dt, D), jnp.float32) * 0.05,
        "bt": jnp.zeros((1, D), jnp.float32),
        "w1": jax.random.normal(ks[1], (D, H), jnp.float32) * 0.05,
        "b1": jnp.zeros((1, H), jnp.float32),
        "w2": jax.random.normal(ks[2], (H, D), jnp.float32) * 0.05,
        "b2": jnp.zeros((1, D), jnp.float32),
    }


if __name__ == "__main__":
    B, S, D, Dt, H = 2, 8, 32, 16, 64
    n_blocks = 3

    key = jax.random.PRNGKey(0)
    kx, kt, kc, km, kp = jax.random.split(key, 5)

    x = jax.random.normal(kx, (B, S, D), jnp.float32)
    t = jax.random.normal(kt, (B, Dt), jnp.float32)
    cond = jax.random.normal(kc, (B, S, D), jnp.float32)
    mask = (jax.random.uniform(km, (B, S, 1)) > 0.2).astype(jnp.float32)

    block_params = [init_block_params(k, Dt, D, H)
                    for k in jax.random.split(kp, n_blocks)]

    # Stack + pad weights once (f32 for exact parity; pass mxu_dtype=jnp.bfloat16
    # on v6e/v7x for ~2x MXU/HBM savings, residual stays f32).
    params = prepare_block_params(block_params, mxu_dtype=jnp.float32)

    out = sequence_with_time_embedding(x, t, cond, mask, params)
    out = jax.block_until_ready(out)

    # pure-JAX reference (mirrors SequenceWithTimeEmbedding.forward)
    def ref(x, t, cond, mask, block_params):
        for p in block_params:
            temb = t @ p["wt"] + p["bt"]
            h = x + temb[:, None, :] + cond
            h1 = jnp.maximum(h @ p["w1"] + p["b1"], 0.0)
            x = x + (h1 @ p["w2"] + p["b2"]) * mask
        return x

    expected = ref(x, t, cond, mask, block_params)
    assert out.shape == (B, S, D)
    assert jnp.allclose(out, expected, atol=1e-4, rtol=1e-4)

    print("KERNEL_OK")
</pallas_src>

<mosaic_0001>
module attributes {stable_mosaic.version = 11 : i64} {
  func.func @_block_kernel(%arg0: i32, %arg1: i32, %arg2: i32, %arg3: memref<1x8x128xf32, #tpu.memory_space<vmem>>, %arg4: memref<1x8x128xf32, #tpu.memory_space<vmem>>, %arg5: memref<1x1x1x128xf32, #tpu.memory_space<vmem>>, %arg6: memref<1x8x128xf32, #tpu.memory_space<vmem>>, %arg7: memref<3x128x128xf32, #tpu.memory_space<vmem>>, %arg8: memref<3x1x128xf32, #tpu.memory_space<vmem>>, %arg9: memref<3x128x128xf32, #tpu.memory_space<vmem>>, %arg10: memref<3x1x128xf32, #tpu.memory_space<vmem>>, %arg11: memref<1x8x128xf32, #tpu.memory_space<vmem>>) attributes {dimension_semantics = [#tpu.dimension_semantics<parallel>, #tpu.dimension_semantics<parallel>, #tpu.dimension_semantics<arbitrary>], iteration_bounds = array<i64: 2, 1, 3>, scalar_prefetch = 0 : i64, scratch_operands = 0 : i64, tpu.core_type = #tpu.core_type<tc>, window_params = [{transform_indices = @transform_0, window_bounds = array<i64: 1, 8, 128>}, {transform_indices = @transform_1, window_bounds = array<i64: 1, 8, 128>}, {transform_indices = @transform_2, window_bounds = array<i64: 1, 1, 1, 128>}, {transform_indices = @transform_3, window_bounds = array<i64: 1, 8, 128>}, {pipeline_mode = #tpu.pipeline_mode<synchronous>, transform_indices = @transform_4, window_bounds = array<i64: 3, 128, 128>}, {pipeline_mode = #tpu.pipeline_mode<synchronous>, transform_indices = @transform_5, window_bounds = array<i64: 3, 1, 128>}, {pipeline_mode = #tpu.pipeline_mode<synchronous>, transform_indices = @transform_6, window_bounds = array<i64: 3, 128, 128>}, {pipeline_mode = #tpu.pipeline_mode<synchronous>, transform_indices = @transform_7, window_bounds = array<i64: 3, 1, 128>}, {transform_indices = @transform_8, window_bounds = array<i64: 1, 8, 128>}]} {
    %c0_i32 = arith.constant 0 : i32
    %0 = arith.cmpi eq, %arg2, %c0_i32 : i32
    %1 = arith.extui %0 : i1 to i32
    %c0_i32_0 = arith.constant 0 : i32
    %2 = arith.cmpi ne, %1, %c0_i32_0 : i32
    scf.if %2 {
      %c0_26 = arith.constant 0 : index
      %c0_27 = arith.constant 0 : index
      %c0_28 = arith.constant 0 : index
      %40 = vector.load %arg3[%c0_26, %c0_27, %c0_28] : memref<1x8x128xf32, #tpu.memory_space<vmem>>, vector<1x8x128xf32>
      %41 = vector.shape_cast %40 : vector<1x8x128xf32> to vector<8x128xf32>
      %c0_29 = arith.constant 0 : index
      %c0_30 = arith.constant 0 : index
      %c0_31 = arith.constant 0 : index
      %42 = vector.load %arg11[%c0_29, %c0_30, %c0_31] : memref<1x8x128xf32, #tpu.memory_space<vmem>>, vector<1x8x128xf32>
      %43 = vector.shape_cast %42 : vector<1x8x128xf32> to vector<8x128xf32>
      %44 = vector.shape_cast %41 : vector<8x128xf32> to vector<1x8x128xf32>
      tpu.vector_store %arg11[%c0_29, %c0_30, %c0_31], %44 {strides = array<i32>} : memref<1x8x128xf32, #tpu.memory_space<vmem>>, vector<1x8x128xf32>,
    } else {
    }
    %3 = arith.index_cast %arg2 : i32 to index
    %c0 = arith.constant 0 : index
    %c0_1 = arith.constant 0 : index
    %4 = vector.load %arg7[%3, %c0, %c0_1] : memref<3x128x128xf32, #tpu.memory_space<vmem>>, vector<1x128x128xf32>
    %5 = vector.shape_cast %4 : vector<1x128x128xf32> to vector<128x128xf32>
    %6 = arith.index_cast %arg2 : i32 to index
    %c0_2 = arith.constant 0 : index
    %c0_3 = arith.constant 0 : index
    %7 = vector.load %arg8[%6, %c0_2, %c0_3] : memref<3x1x128xf32, #tpu.memory_space<vmem>>, vector<1x1x128xf32>
    %8 = vector.shape_cast %7 : vector<1x1x128xf32> to vector<1x128xf32>
    %9 = arith.index_cast %arg2 : i32 to index
    %c0_4 = arith.constant 0 : index
    %c0_5 = arith.constant 0 : index
    %10 = vector.load %arg9[%9, %c0_4, %c0_5] : memref<3x128x128xf32, #tpu.memory_space<vmem>>, vector<1x128x128xf32>
    %11 = vector.shape_cast %10 : vector<1x128x128xf32> to vector<128x128xf32>
    %12 = arith.index_cast %arg2 : i32 to index
    %c0_6 = arith.constant 0 : index
    %c0_7 = arith.constant 0 : index
    %13 = vector.load %arg10[%12, %c0_6, %c0_7] : memref<3x1x128xf32, #tpu.memory_space<vmem>>, vector<1x1x128xf32>
    %14 = vector.shape_cast %13 : vector<1x1x128xf32> to vector<1x128xf32>
    %c0_8 = arith.constant 0 : index
    %c0_9 = arith.constant 0 : index
    %c0_10 = arith.constant 0 : index
    %15 = vector.load %arg11[%c0_8, %c0_9, %c0_10] : memref<1x8x128xf32, #tpu.memory_space<vmem>>, vector<1x8x128xf32>
    %16 = vector.shape_cast %15 : vector<1x8x128xf32> to vector<8x128xf32>
    %c0_11 = arith.constant 0 : index
    %c0_12 = arith.constant 0 : index
    %c0_13 = arith.constant 0 : index
    %17 = vector.load %arg4[%c0_11, %c0_12, %c0_13] : memref<1x8x128xf32, #tpu.memory_space<vmem>>, vector<1x8x128xf32>
    %18 = vector.shape_cast %17 : vector<1x8x128xf32> to vector<8x128xf32>
    %19 = arith.addf %16, %18 : vector<8x128xf32>
    %c0_14 = arith.constant 0 : index
    %c0_15 = arith.constant 0 : index
    %c0_16 = arith.constant 0 : index
    %c0_17 = arith.constant 0 : index
    %20 = vector.load %arg5[%c0_14, %c0_15, %c0_16, %c0_17] : memref<1x1x1x128xf32, #tpu.memory_space<vmem>>, vector<1x1x1x128xf32>
    %21 = vector.shape_cast %20 : vector<1x1x1x128xf32> to vector<1x128xf32>
    %22 = vector.broadcast %21 : vector<1x128xf32> to vector<8x128xf32>
    %23 = arith.addf %19, %22 : vector<8x128xf32>
    %cst = arith.constant dense<0.000000e+00> : vector<8x128xf32>
    %24 = tpu.matmul %23, %5, %cst {dimension_numbers = #tpu.dot_dimension_numbers<[1], [0], [0], [1], [0, 0, 1, 1], [], []>} : vector<8x128xf32>, vector<128x128xf32>, vector<8x128xf32> -> vector<8x128xf32>
    %25 = vector.broadcast %8 : vector<1x128xf32> to vector<8x128xf32>
    %26 = arith.addf %24, %25 : vector<8x128xf32>
    %cst_18 = arith.constant 0.000000e+00 : f32
    %27 = vector.broadcast %cst_18 : f32 to vector<8x128xf32>
    %28 = arith.maximumf %26, %27 : vector<8x128xf32>
    %cst_19 = arith.constant dense<0.000000e+00> : vector<8x128xf32>
    %29 = tpu.matmul %28, %11, %cst_19 {dimension_numbers = #tpu.dot_dimension_numbers<[1], [0], [0], [1], [0, 0, 1, 1], [], []>} : vector<8x128xf32>, vector<128x128xf32>, vector<8x128xf32> -> vector<8x128xf32>
    %30 = vector.broadcast %14 : vector<1x128xf32> to vector<8x128xf32>
    %31 = arith.addf %29, %30 : vector<8x128xf32>
    %c0_20 = arith.constant 0 : index
    %c0_21 = arith.constant 0 : index
    %c0_22 = arith.constant 0 : index
    %32 = vector.load %arg6[%c0_20, %c0_21, %c0_22] : memref<1x8x128xf32, #tpu.memory_space<vmem>>, vector<1x8x1xf32>
    %33 = vector.shape_cast %32 : vector<1x8x1xf32> to vector<8x1xf32>
    %34 = vector.broadcast %33 : vector<8x1xf32> to vector<8x128xf32>
    %35 = arith.mulf %31, %34 : vector<8x128xf32>
    %36 = arith.addf %16, %35 : vector<8x128xf32>
    %c0_23 = arith.constant 0 : index
    %c0_24 = arith.constant 0 : index
    %c0_25 = arith.constant 0 : index
    %37 = vector.load %arg11[%c0_23, %c0_24, %c0_25] : memref<1x8x128xf32, #tpu.memory_space<vmem>>, vector<1x8x128xf32>
    %38 = vector.shape_cast %37 : vector<1x8x128xf32> to vector<8x128xf32>
    %39 = vector.shape_cast %36 : vector<8x128xf32> to vector<1x8x128xf32>
    tpu.vector_store %arg11[%c0_23, %c0_24, %c0_25], %39 {strides = array<i32>} : memref<1x8x128xf32, #tpu.memory_space<vmem>>, vector<1x8x128xf32>,
    return
  }
  func.func @transform_0(%arg0: i32, %arg1: i32, %arg2: i32) -> (i32, i32, i32) {
    %c0_i32 = arith.constant 0 : i32
    %c0_i32_0 = arith.constant 0 : i32
    return %arg0, %arg1, %c0_i32 : i32, i32, i32
  }
  func.func @transform_1(%arg0: i32, %arg1: i32, %arg2: i32) -> (i32, i32, i32) {
    %c0_i32 = arith.constant 0 : i32
    %c0_i32_0 = arith.constant 0 : i32
    return %arg0, %arg1, %c0_i32 : i32, i32, i32
  }
  func.func @transform_2(%arg0: i32, %arg1: i32, %arg2: i32) -> (i32, i32, i32, i32) {
    %c0_i32 = arith.constant 0 : i32
    %c0_i32_0 = arith.constant 0 : i32
    %c0_i32_1 = arith.constant 0 : i32
    return %arg2, %arg0, %c0_i32, %c0_i32_0 : i32, i32, i32, i32
  }
  func.func @transform_3(%arg0: i32, %arg1: i32, %arg2: i32) -> (i32, i32, i32) {
    %c0_i32 = arith.constant 0 : i32
    %c0_i32_0 = arith.constant 0 : i32
    return %arg0, %arg1, %c0_i32 : i32, i32, i32
  }
  func.func @transform_4(%arg0: i32, %arg1: i32, %arg2: i32) -> (i32, i32, i32) {
    %c0_i32 = arith.constant 0 : i32
    %c0_i32_0 = arith.constant 0 : i32
    %c0_i32_1 = arith.constant 0 : i32
    %c0_i32_2 = arith.constant 0 : i32
    return %c0_i32, %c0_i32_0, %c0_i32_1 : i32, i32, i32
  }
  func.func @transform_5(%arg0: i32, %arg1: i32, %arg2: i32) -> (i32, i32, i32) {
    %c0_i32 = arith.constant 0 : i32
    %c0_i32_0 = arith.constant 0 : i32
    %c0_i32_1 = arith.constant 0 : i32
    %c0_i32_2 = arith.constant 0 : i32
    return %c0_i32, %c0_i32_0, %c0_i32_1 : i32, i32, i32
  }
  func.func @transform_6(%arg0: i32, %arg1: i32, %arg2: i32) -> (i32, i32, i32) {
    %c0_i32 = arith.constant 0 : i32
    %c0_i32_0 = arith.constant 0 : i32
    %c0_i32_1 = arith.constant 0 : i32
    %c0_i32_2 = arith.constant 0 : i32
    return %c0_i32, %c0_i32_0, %c0_i32_1 : i32, i32, i32
  }
  func.func @transform_7(%arg0: i32, %arg1: i32, %arg2: i32) -> (i32, i32, i32) {
    %c0_i32 = arith.constant 0 : i32
    %c0_i32_0 = arith.constant 0 : i32
    %c0_i32_1 = arith.constant 0 : i32
    %c0_i32_2 = arith.constant 0 : i32
    return %c0_i32, %c0_i32_0, %c0_i32_1 : i32, i32, i32
  }
  func.func @transform_8(%arg0: i32, %arg1: i32, %arg2: i32) -> (i32, i32, i32) {
    %c0_i32 = arith.constant 0 : i32
    %c0_i32_0 = arith.constant 0 : i32
    return %arg0, %arg1, %c0_i32 : i32, i32, i32
  }
}

</mosaic_0001>

<llo_original>
// kernel: tpu_custom_call.1
$region0: #{tpu_custom_call.1}
  #allocation0 [shape = 'u32[]', space=smem, size = 0x4, offset = 0x4, fixed_abs, tag = 'smem constant byte address 0x4 - core index']
  #allocation1 [shape = 'u32[144,128]{1,0:T(1,128)}', space=vmem, size = 0x12000, scoped, tag = 'internal scratch']
  %s0 = inlined_call_operand.hbm [shape: f32[2,8,128], index: 0, kind: input, shape index: {}, may-alias: {0,8}]
  %s1 = inlined_call_operand.vmem [shape: f32[2,8,128], index: 1, kind: input, shape index: {}]
  %s2 = inlined_call_operand.vmem [shape: f32[3,2,1,128], index: 2, kind: input, shape index: {}]
  %s3 = inlined_call_operand.vmem [shape: f32[2,8,128], index: 3, kind: input, shape index: {}]
  %s4 = inlined_call_operand.hbm [shape: f32[3,128,128], index: 4, kind: input, shape index: {}]
  %s5 = inlined_call_operand.vmem [shape: f32[3,1,128], index: 5, kind: input, shape index: {}]
  %s6 = inlined_call_operand.hbm [shape: f32[3,128,128], index: 6, kind: input, shape index: {}]
  %s7 = inlined_call_operand.vmem [shape: f32[3,1,128], index: 7, kind: input, shape index: {}]
  %s8 = inlined_call_operand.hbm [shape: f32[2,8,128], index: 8, kind: output, shape index: {}, may-alias: {0,8}]
  %s9 = sld [smem:[#allocation0]]
  $region81: #{tpu_custom_call.1} parent=0
    _
  %s11 = ssub.s32 1, %s9
  %s12 = scalar_select 0, %s11, %s9
  $region1: #{tpu_custom_call.1} parent=0
    #allocation2 [shape = 'u8[8192]{0}', space=vmem, size = 0x2000, scoped, tag = 'input window, operand 0']
    #allocation3 [shape = 's32[2]{0}', space=sflag, size = 0x8, scoped, tag = 'scoped memory for tpu_custom_call.1']
    #allocation4 [shape = 's32[2]{0}', space=sflag, size = 0x8, scoped, tag = 'scoped memory for tpu_custom_call.1']
    #allocation5 [shape = 'u8[196608]{0}', space=vmem, size = 0x30000, scoped, tag = 'input window, operand 4, single buffered']
    #allocation6 [shape = 's32[1]{0}', space=sflag, size = 0x4, scoped, tag = 'scoped memory for tpu_custom_call.1']
    #allocation7 [shape = 'u8[196608]{0}', space=vmem, size = 0x30000, scoped, tag = 'input window, operand 6, single buffered']
    #allocation8 [shape = 'u8[8192]{0}', space=vmem, size = 0x2000, scoped, tag = 'output window, operand 0']
    %13 = vsyncpa [#allocation3], 0
    %s14 = scalar_lea.sflag [#allocation3], 1
    %15 = vsyncpa %s14, 0
    %16 = vsyncpa [#allocation6], 0
    %17 = vsyncpa [#allocation4], 0
    %s18 = scalar_lea.sflag [#allocation4], 1
    %19 = vsyncpa %s18, 0
    loop: start=0, step=1, limit=8
    $region2: #{tpu_custom_call.1} parent=1 // loop_pre_header
      _
    $region3: #{tpu_custom_call.1} parent=1 // loop_header
      %s21 = sphi 0, %s25
      %p22 = scmp.ge.s32.totalorder %s21, 8
      %s28 = sphi 0, %s47
      %s29 = sphi 0, %s43
      %s30 = sphi 0, %s39
      %s31 = sphi 0, %s28
      %s32 = sphi 0, %s29
      %s33 = sphi 0, %s30
      %s34 = sphi 0, %s31
      %s35 = sphi 0, %s32
      %s36 = sphi 0, %s33
      %s52 = sphi 0, %s54
      %s55 = sphi 0, %s52
      %s56 = sphi 0, %s55
      %s72 = sphi 0, %s56
      %s80 = sphi 0, %s82
      %s83 = sphi 0, %s80
      %s84 = sphi 0, %s83
      %s100 = sphi 0, %s84
      %s108 = sphi 0, %s110
      %s111 = sphi 0, %s108
      %s112 = sphi 0, %s111
      %s128 = sphi 0, %s112
      %s136 = sphi 0, %s138
      %s139 = sphi 0, %s136
      %s140 = sphi 0, %s139
      %s156 = sphi 0, %s140
      %s160 = sphi 0, %s160
      %s162 = sphi 0, %s160
      %s163 = sphi 0, %s162
      %s177 = sphi 0, %s163
      %s181 = sphi 0, %s181
      %s183 = sphi 0, %s181
      %s184 = sphi 0, %s183
      %s198 = sphi 0, %s184
      %s202 = sphi 0, %s202
      %s204 = sphi 0, %s202
      %s205 = sphi 0, %s204
      %s219 = sphi 0, %s205
      %s223 = sphi 0, %s223
      %s225 = sphi 0, %s223
      %s226 = sphi 0, %s225
      %s240 = sphi 0, %s226
      %s248 = sphi 0, %s250
      %s251 = sphi 0, %s248
      %s252 = sphi 0, %s251
      %s268 = sphi 0, %s252
    $region4: #{tpu_custom_call.1} parent=1 // loop_header_branch
      %24 = sbr.rel (%p22) target = $region8
    $region5: #{tpu_custom_call.1} parent=1 // loop_body
      %s26 = ssub.s32 %s21, 1
      %s27 = ssub.s32 %s21, 2
      %s37 = sadd.s32 1, %s30
      %p38 = scmp.ge.s32.totalorder %s37, 3
      %s39 = scalar_select %p38, 0, %s37
      %s40 = sadd.s32 1, %s29
      %s41 = scalar_select %p38, %s40, %s29
      %p42 = scmp.ge.s32.totalorder %s41, 1
      %s43 = scalar_select %p42, 0, %s41
      %s44 = sadd.s32 1, %s28
      %s45 = scalar_select %p42, %s44, %s28
      %p46 = scmp.ge.s32.totalorder %s45, 2
      %s47 = scalar_select %p46, 0, %s45
      %s48 = ssub.s32 %s28, %s47
      %s49 = ssub.s32 %s29, %s43
      %s50 = sor.u32 %s48, %s49
      %p51 = scmp.eq.s32.totalorder %s50, 0
      %s53 = sadd.s32 %s52, 1
      %s54 = scalar_select %p51, %s52, %s53
      %p57 = pneg %p51
      %p58 = scmp.eq.s32.totalorder %s21, 5
      %p59 = por %p57, %p58
      %p60 = scmp.ne.s32.totalorder %s52, %s55
      %p61 = scmp.eq.s32.totalorder %s21, 0
      %p62 = por %p60, %p61
      %p63 = scmp.ne.s32.totalorder %s52, %s55
      %p64 = scmp.eq.s32.totalorder %s26, 5
      %p65 = por %p63, %p64
      %p66 = scmp.ne.s32.totalorder %s55, %s56
      %p67 = scmp.eq.s32.totalorder %s26, 0
      %p68 = por %p66, %p67
      %p69 = scmp.ne.s32.totalorder %s55, %s56
      %p70 = scmp.eq.s32.totalorder %s27, 5
      %p71 = por %p69, %p70
      %p73 = scmp.ne.s32.totalorder %s56, %s72
      %p74 = scmp.eq.s32.totalorder %s27, 0
      %p75 = por %p73, %p74
      %s76 = ssub.s32 %s28, %s47
      %s77 = ssub.s32 %s29, %s43
      %s78 = sor.u32 %s76, %s77
      %p79 = scmp.eq.s32.totalorder %s78, 0
      %s81 = sadd.s32 %s80, 1
      %s82 = scalar_select %p79, %s80, %s81
      %p85 = pneg %p79
      %p86 = scmp.eq.s32.totalorder %s21, 5
      %p87 = por %p85, %p86
      %p88 = scmp.ne.s32.totalorder %s80, %s83
      %p89 = scmp.eq.s32.totalorder %s21, 0
      %p90 = por %p88, %p89
      %p91 = scmp.ne.s32.totalorder %s80, %s83
      %p92 = scmp.eq.s32.totalorder %s26, 5
      %p93 = por %p91, %p92
      %p94 = scmp.ne.s32.totalorder %s83, %s84
      %p95 = scmp.eq.s32.totalorder %s26, 0
      %p96 = por %p94, %p95
      %p97 = scmp.ne.s32.totalorder %s83, %s84
      %p98 = scmp.eq.s32.totalorder %s27, 5
      %p99 = por %p97, %p98
      %p101 = scmp.ne.s32.totalorder %s84, %s100
      %p102 = scmp.eq.s32.totalorder %s27, 0
      %p103 = por %p101, %p102
      %s104 = ssub.s32 %s30, %s39
      %s105 = ssub.s32 %s28, %s47
      %s106 = sor.u32 %s104, %s105
      %p107 = scmp.eq.s32.totalorder %s106, 0
      %s109 = sadd.s32 %s108, 1
      %s110 = scalar_select %p107, %s108, %s109
      %p113 = pneg %p107
      %p114 = scmp.eq.s32.totalorder %s21, 5
      %p115 = por %p113, %p114
      %p116 = scmp.ne.s32.totalorder %s108, %s111
      %p117 = scmp.eq.s32.totalorder %s21, 0
      %p118 = por %p116, %p117
      %p119 = scmp.ne.s32.totalorder %s108, %s111
      %p120 = scmp.eq.s32.totalorder %s26, 5
      %p121 = por %p119, %p120
      %p122 = scmp.ne.s32.totalorder %s111, %s112
      %p123 = scmp.eq.s32.totalorder %s26, 0
      %p124 = por %p122, %p123
      %p125 = scmp.ne.s32.totalorder %s111, %s112
      %p126 = scmp.eq.s32.totalorder %s27, 5
      %p127 = por %p125, %p126
      %p129 = scmp.ne.s32.totalorder %s112, %s128
      %p130 = scmp.eq.s32.totalorder %s27, 0
      %p131 = por %p129, %p130
      %s132 = ssub.s32 %s28, %s47
      %s133 = ssub.s32 %s29, %s43
      %s134 = sor.u32 %s132, %s133
      %p135 = scmp.eq.s32.totalorder %s134, 0
      %s137 = sadd.s32 %s136, 1
      %s138 = scalar_select %p135, %s136, %s137
      %p141 = pneg %p135
      %p142 = scmp.eq.s32.totalorder %s21, 5
      %p143 = por %p141, %p142
      %p144 = scmp.ne.s32.totalorder %s136, %s139
      %p145 = scmp.eq.s32.totalorder %s21, 0
      %p146 = por %p144, %p145
      %p147 = scmp.ne.s32.totalorder %s136, %s139
      %p148 = scmp.eq.s32.totalorder %s26, 5
      %p149 = por %p147, %p148
      %p150 = scmp.ne.s32.totalorder %s139, %s140
      %p151 = scmp.eq.s32.totalorder %s26, 0
      %p152 = por %p150, %p151
      %p153 = scmp.ne.s32.totalorder %s139, %s140
      %p154 = scmp.eq.s32.totalorder %s27, 5
      %p155 = por %p153, %p154
      %p157 = scmp.ne.s32.totalorder %s140, %s156
      %p158 = scmp.eq.s32.totalorder %s27, 0
      %p159 = por %p157, %p158
      %s161 = sadd.s32 %s160, 1
      %p164 = scmp.eq.s32.totalorder %s21, 5
      %p165 = scmp.ne.s32.totalorder %s160, %s162
      %p166 = scmp.eq.s32.totalorder %s21, 0
      %p167 = por %p165, %p166
      %p168 = scmp.ne.s32.totalorder %s160, %s162
      %p169 = scmp.eq.s32.totalorder %s26, 5
      %p170 = por %p168, %p169
      %p171 = scmp.ne.s32.totalorder %s162, %s163
      %p172 = scmp.eq.s32.totalorder %s26, 0
      %p173 = por %p171, %p172
      %p174 = scmp.ne.s32.totalorder %s162, %s163
      %p175 = scmp.eq.s32.totalorder %s27, 5
      %p176 = por %p174, %p175
      %p178 = scmp.ne.s32.totalorder %s163, %s177
      %p179 = scmp.eq.s32.totalorder %s27, 0
      %p180 = por %p178, %p179
      %s182 = sadd.s32 %s181, 1
      %p185 = scmp.eq.s32.totalorder %s21, 5
      %p186 = scmp.ne.s32.totalorder %s181, %s183
      %p187 = scmp.eq.s32.totalorder %s21, 0
      %p188 = por %p186, %p187
      %p189 = scmp.ne.s32.totalorder %s181, %s183
      %p190 = scmp.eq.s32.totalorder %s26, 5
      %p191 = por %p189, %p190
      %p192 = scmp.ne.s32.totalorder %s183, %s184
      %p193 = scmp.eq.s32.totalorder %s26, 0
      %p194 = por %p192, %p193
      %p195 = scmp.ne.s32.totalorder %s183, %s184
      %p196 = scmp.eq.s32.totalorder %s27, 5
      %p197 = por %p195, %p196
      %p199 = scmp.ne.s32.totalorder %s184, %s198
      %p200 = scmp.eq.s32.totalorder %s27, 0
      %p201 = por %p199, %p200
      %s203 = sadd.s32 %s202, 1
      %p206 = scmp.eq.s32.totalorder %s21, 5
      %p207 = scmp.ne.s32.totalorder %s202, %s204
      %p208 = scmp.eq.s32.totalorder %s21, 0
      %p209 = por %p207, %p208
      %p210 = scmp.ne.s32.totalorder %s202, %s204
      %p211 = scmp.eq.s32.totalorder %s26, 5
      %p212 = por %p210, %p211
      %p213 = scmp.ne.s32.totalorder %s204, %s205
      %p214 = scmp.eq.s32.totalorder %s26, 0
      %p215 = por %p213, %p214
      %p216 = scmp.ne.s32.totalorder %s204, %s205
      %p217 = scmp.eq.s32.totalorder %s27, 5
      %p218 = por %p216, %p217
      %p220 = scmp.ne.s32.totalorder %s205, %s219
      %p221 = scmp.eq.s32.totalorder %s27, 0
      %p222 = por %p220, %p221
      %s224 = sadd.s32 %s223, 1
      %p227 = scmp.eq.s32.totalorder %s21, 5
      %p228 = scmp.ne.s32.totalorder %s223, %s225
      %p229 = scmp.eq.s32.totalorder %s21, 0
      %p230 = por %p228, %p229
      %p231 = scmp.ne.s32.totalorder %s223, %s225
      %p232 = scmp.eq.s32.totalorder %s26, 5
      %p233 = por %p231, %p232
      %p234 = scmp.ne.s32.totalorder %s225, %s226
      %p235 = scmp.eq.s32.totalorder %s26, 0
      %p236 = por %p234, %p235
      %p237 = scmp.ne.s32.totalorder %s225, %s226
      %p238 = scmp.eq.s32.totalorder %s27, 5
      %p239 = por %p237, %p238
      %p241 = scmp.ne.s32.totalorder %s226, %s240
      %p242 = scmp.eq.s32.totalorder %s27, 0
      %p243 = por %p241, %p242
      %s244 = ssub.s32 %s28, %s47
      %s245 = ssub.s32 %s29, %s43
      %s246 = sor.u32 %s244, %s245
      %p247 = scmp.eq.s32.totalorder %s246, 0
      %s249 = sadd.s32 %s248, 1
      %s250 = scalar_select %p247, %s248, %s249
      %p253 = pneg %p247
      %p254 = scmp.eq.s32.totalorder %s21, 5
      %p255 = por %p253, %p254
      %p256 = scmp.ne.s32.totalorder %s248, %s251
      %p257 = scmp.eq.s32.totalorder %s21, 0
      %p258 = por %p256, %p257
      %p259 = scmp.ne.s32.totalorder %s248, %s251
      %p260 = scmp.eq.s32.totalorder %s26, 5
      %p261 = por %p259, %p260
      %p262 = scmp.ne.s32.totalorder %s251, %s252
      %p263 = scmp.eq.s32.totalorder %s26, 0
      %p264 = por %p262, %p263
      %p265 = scmp.ne.s32.totalorder %s251, %s252
      %p266 = scmp.eq.s32.totalorder %s27, 5
      %p267 = por %p265, %p266
      %p269 = scmp.ne.s32.totalorder %s252, %s268
      %p270 = scmp.eq.s32.totalorder %s27, 0
      %p271 = por %p269, %p270
      %p272 = scmp.le.s32.totalorder 1, %s21
      %p273 = scmp.lt.s32.totalorder %s21, 7
      %p274 = pnand %p272, %p273
      %p275 = pneg %p274
      // Predicated region
      $region9: #{tpu_custom_call.1} parent=5 // pred_check
        _
      $region10: #{tpu_custom_call.1} parent=5 // pred_check_branch
        %277 = sbr.rel (%p274) target = $region12
      $region11: #{tpu_custom_call.1} parent=5 // pred_region
        %s278 = ssub.s32 %s21, 1
        // Predicated region
        $region13: #{tpu_custom_call.1} parent=11 // pred_check
          %p279 = pneg %p173
        $region14: #{tpu_custom_call.1} parent=11 // pred_check_branch
          %281 = sbr.rel (%p279) target = $region16
        $region15: #{tpu_custom_call.1} parent=11 // pred_region
          %s283 = ssub.s32 6144, 6144
          %284 = vsyncadd [#allocation6], %s283
          %s285 = sshll.u32 [#allocation5], 4
          %s286 = int_to_ptr.vmem [resolvable:$true] %s285
          %291 = dma.hbm_to_vmem [thread:$0]  %s4, 6144, %s286, [#allocation6], 128, 128, 8
        $region16: #{tpu_custom_call.1} parent=11 // pred_fallthru
          _
        // Predicated region
        $region17: #{tpu_custom_call.1} parent=11 // pred_check
          %p292 = pneg %p194
        $region18: #{tpu_custom_call.1} parent=11 // pred_check_branch
          %294 = sbr.rel (%p292) target = $region20
        $region19: #{tpu_custom_call.1} parent=11 // pred_region
          _
        $region20: #{tpu_custom_call.1} parent=11 // pred_fallthru
          _
        // Predicated region
        $region21: #{tpu_custom_call.1} parent=11 // pred_check
          %p295 = pneg %p215
        $region22: #{tpu_custom_call.1} parent=11 // pred_check_branch
          %297 = sbr.rel (%p295) target = $region24
        $region23: #{tpu_custom_call.1} parent=11 // pred_region
          %s299 = ssub.s32 6144, 6144
          %300 = vsyncadd [#allocation6], %s299
          %s301 = sshll.u32 [#allocation7], 4
          %s302 = int_to_ptr.vmem [resolvable:$true] %s301
          %307 = dma.hbm_to_vmem [thread:$0]  %s6, 6144, %s302, [#allocation6], 128, 128, 8
        $region24: #{tpu_custom_call.1} parent=11 // pred_fallthru
          _
        // Predicated region
        $region25: #{tpu_custom_call.1} parent=11 // pred_check
          %p308 = pneg %p236
        $region26: #{tpu_custom_call.1} parent=11 // pred_check_branch
          %310 = sbr.rel (%p308) target = $region28
        $region27: #{tpu_custom_call.1} parent=11 // pred_region
          _
        $region28: #{tpu_custom_call.1} parent=11 // pred_fallthru
          _
      $region12: #{tpu_custom_call.1} parent=5 // pred_fallthru
        _
      %p311 = scmp.lt.s32.totalorder %s21, 6
      // Predicated region
      $region29: #{tpu_custom_call.1} parent=5 // pred_check
        %p312 = pneg %p311
      $region30: #{tpu_custom_call.1} parent=5 // pred_check_branch
        %314 = sbr.rel (%p312) target = $region32
      $region31: #{tpu_custom_call.1} parent=5 // pred_region
        // Predicated region
        $region33: #{tpu_custom_call.1} parent=31 // pred_check
          %p315 = pneg %p62
        $region34: #{tpu_custom_call.1} parent=31 // pred_check_branch
          %317 = sbr.rel (%p315) target = $region36
        $region35: #{tpu_custom_call.1} parent=31 // pred_region
          %s318 = sand.u32 %s52, 1
          %s319 = scalar_lea.sflag [#allocation3], %s318
          %s320 = sand.u32 %s52, 1
          %s321 = smul.addr %s320, 8
          %s322 = scalar_lea.vmem [#allocation2], %s321
          %s324 = ssub.s32 128, 128
          %325 = vsyncadd %s319, %s324
          %s326 = sadd.s32 %s29, %s28
          %s327 = smul.addr %s326, 128
          %s328 = scalar_lea.hbm %s0, %s327
          %s330 = sshll.u32 %s322, 4
          %s331 = int_to_ptr.vmem [resolvable:$true] %s330
          %333 = dma.hbm_to_vmem [thread:$0]  %s328, 128, %s331, %s319
        $region36: #{tpu_custom_call.1} parent=31 // pred_fallthru
          _
        // Predicated region
        $region37: #{tpu_custom_call.1} parent=31 // pred_check
          %p334 = pneg %p90
        $region38: #{tpu_custom_call.1} parent=31 // pred_check_branch
          %336 = sbr.rel (%p334) target = $region40
        $region39: #{tpu_custom_call.1} parent=31 // pred_region
          %p337 = scmp.lt.s32.totalorder %s28, 1
          %s338 = scalar_select %p337, %s28, 1
          %p339 = scmp.lt.s32.totalorder %s29, 0
          %s340 = scalar_select %p339, %s29, 0
          %s341 = sadd.s32 %s340, %s338
          %s342 = smul.addr %s341, 8
          %s343 = scalar_lea.vmem %s1, %s342
        $region40: #{tpu_custom_call.1} parent=31 // pred_fallthru
          _
        // Predicated region
        $region41: #{tpu_custom_call.1} parent=31 // pred_check
          %p344 = pneg %p118
        $region42: #{tpu_custom_call.1} parent=31 // pred_check_branch
          %346 = sbr.rel (%p344) target = $region44
        $region43: #{tpu_custom_call.1} parent=31 // pred_region
          %p347 = scmp.lt.s32.totalorder %s30, 2
          %s348 = scalar_select %p347, %s30, 2
          %p349 = scmp.lt.s32.totalorder %s28, 1
          %s350 = scalar_select %p349, %s28, 1
          %s351 = smul.addr %s348, 2
          %s352 = sadd.s32 %s350, %s351
          %s353 = scalar_lea.vmem %s2, %s352
        $region44: #{tpu_custom_call.1} parent=31 // pred_fallthru
          _
        // Predicated region
        $region45: #{tpu_custom_call.1} parent=31 // pred_check
          %p354 = pneg %p146
        $region46: #{tpu_custom_call.1} parent=31 // pred_check_branch
          %356 = sbr.rel (%p354) target = $region48
        $region47: #{tpu_custom_call.1} parent=31 // pred_region
          %p357 = scmp.lt.s32.totalorder %s28, 1
          %s358 = scalar_select %p357, %s28, 1
          %p359 = scmp.lt.s32.totalorder %s29, 0
          %s360 = scalar_select %p359, %s29, 0
          %s361 = sadd.s32 %s360, %s358
          %s362 = smul.addr %s361, 8
          %s363 = scalar_lea.vmem %s3, %s362
        $region48: #{tpu_custom_call.1} parent=31 // pred_fallthru
          _
      $region32: #{tpu_custom_call.1} parent=5 // pred_fallthru
        _
      %p364 = scmp.le.s32.totalorder 1, %s21
      %p365 = scmp.lt.s32.totalorder %s21, 7
      %p366 = pnand %p364, %p365
      %p367 = pneg %p366
      // Predicated region
      $region49: #{tpu_custom_call.1} parent=5 // pred_check
        _
      $region50: #{tpu_custom_call.1} parent=5 // pred_check_branch
        %369 = sbr.rel (%p366) target = $region52
      $region51: #{tpu_custom_call.1} parent=5 // pred_region
        %s370 = ssub.s32 %s21, 1
        %s371 = sand.u32 %s55, 1
        %s372 = scalar_lea.sflag [#allocation3], %s371
        %s373 = sand.u32 %s55, 1
        %s374 = smul.addr %s373, 8
        %s375 = scalar_lea.vmem [#allocation2], %s374
        // Predicated region
        $region53: #{tpu_custom_call.1} parent=51 // pred_check
          %p376 = pneg %p68
        $region54: #{tpu_custom_call.1} parent=51 // pred_check_branch
          %378 = sbr.rel (%p376) target = $region56
        $region55: #{tpu_custom_call.1} parent=51 // pred_region
          %379 = dma.done %s372, 128
        $region56: #{tpu_custom_call.1} parent=51 // pred_fallthru
          _
        // Predicated region
        $region57: #{tpu_custom_call.1} parent=51 // pred_check
          %p380 = pneg %p173
        $region58: #{tpu_custom_call.1} parent=51 // pred_check_branch
          %382 = sbr.rel (%p380) target = $region60
        $region59: #{tpu_custom_call.1} parent=51 // pred_region
          %383 = dma.done [#allocation6], 6144
        $region60: #{tpu_custom_call.1} parent=51 // pred_fallthru
          _
        // Predicated region
        $region61: #{tpu_custom_call.1} parent=51 // pred_check
          %p384 = pneg %p215
        $region62: #{tpu_custom_call.1} parent=51 // pred_check_branch
          %386 = sbr.rel (%p384) target = $region64
        $region63: #{tpu_custom_call.1} parent=51 // pred_region
          %387 = dma.done [#allocation6], 6144
        $region64: #{tpu_custom_call.1} parent=51 // pred_fallthru
          _
        %s388 = sand.u32 %s55, 1
        %s389 = scalar_lea.sflag [#allocation3], %s388
        %s390 = sand.u32 %s55, 1
        %s391 = smul.addr %s390, 8
        %s392 = scalar_lea.vmem [#allocation2], %s391
        %p393 = pneg %p68
        %p394 = pneg %p65
        %p395 = scmp.lt.s32.totalorder %s31, 1
        %s396 = scalar_select %p395, %s31, 1
        %p397 = scmp.lt.s32.totalorder %s32, 0
        %s398 = scalar_select %p397, %s32, 0
        %s399 = sadd.s32 %s398, %s396
        %s400 = smul.addr %s399, 8
        %s401 = scalar_lea.vmem %s1, %s400
        %p402 = pneg %p96
        %p403 = pneg %p93
        %p404 = scmp.lt.s32.totalorder %s33, 2
        %s405 = scalar_select %p404, %s33, 2
        %p406 = scmp.lt.s32.totalorder %s31, 1
        %s407 = scalar_select %p406, %s31, 1
        %s408 = smul.addr %s405, 2
        %s409 = sadd.s32 %s407, %s408
        %s410 = scalar_lea.vmem %s2, %s409
        %p411 = pneg %p124
        %p412 = pneg %p121
        %p413 = scmp.lt.s32.totalorder %s31, 1
        %s414 = scalar_select %p413, %s31, 1
        %p415 = scmp.lt.s32.totalorder %s32, 0
        %s416 = scalar_select %p415, %s32, 0
        %s417 = sadd.s32 %s416, %s414
        %s418 = smul.addr %s417, 8
        %s419 = scalar_lea.vmem %s3, %s418
        %p420 = pneg %p152
        %p421 = pneg %p149
        %p422 = pneg %p173
        %p423 = pneg %p170
        %p424 = pneg %p194
        %p425 = pneg %p191
        %p426 = pneg %p215
        %p427 = pneg %p212
        %p428 = pneg %p236
        %p429 = pneg %p233
        %p430 = pneg %p264
        %p431 = pneg %p261
        %s432 = sand.u32 %s251, 1
        %s433 = scalar_lea.sflag [#allocation4], %s432
        %s434 = sand.u32 %s251, 1
        %s435 = smul.addr %s434, 8
        %s436 = scalar_lea.vmem [#allocation8], %s435
        %p437 = scmp.lt.s32.totalorder %s31, 1
        %s438 = scalar_select %p437, %s31, 1
        %p439 = scmp.lt.s32.totalorder %s32, 0
        %s440 = scalar_select %p439, %s32, 0
        %s441 = sadd.s32 %s440, %s438
        %s442 = smul.addr %s441, 8
        %s443 = scalar_lea.vmem %s1, %s442
        %p444 = scmp.lt.s32.totalorder %s33, 2
        %s445 = scalar_select %p444, %s33, 2
        %p446 = scmp.lt.s32.totalorder %s31, 1
        %s447 = scalar_select %p446, %s31, 1
        %s448 = smul.addr %s445, 2
        %s449 = sadd.s32 %s447, %s448
        %s450 = scalar_lea.vmem %s2, %s449
        %p451 = scmp.lt.s32.totalorder %s31, 1
        %s452 = scalar_select %p451, %s31, 1
        %p453 = scmp.lt.s32.totalorder %s32, 0
        %s454 = scalar_select %p453, %s32, 0
        %s455 = sadd.s32 %s454, %s452
        %s456 = smul.addr %s455, 8
        %s457 = scalar_lea.vmem %s3, %s456
        %p458 = scmp.eq.s32.totalorder %s33, 0
        // Predicated region
        $region65: #{tpu_custom_call.1} parent=51 // pred_check
          %p459 = pneg %p458
        $region66: #{tpu_custom_call.1} parent=51 // pred_check_branch
          %461 = sbr.rel (%p459) target = $region68
        $region67: #{tpu_custom_call.1} parent=51 // pred_region
          %v462 = vld [vmem:[%s375] sm:$0xff]
          %463 = vst [vmem:[%s436] sm:$0xff] %v462
        $region68: #{tpu_custom_call.1} parent=51 // pred_fallthru
          _
        %s464 = smul.u32 %s33, 128
        %s465 = scalar_lea.vmem [#allocation5], %s464
        %v466 = vld [vmem:[%s465] sm:$0xff]
        %v467 = vld [vmem:[%s465 + $0x8] sm:$0xff]
        %v468 = vld [vmem:[%s465 + $0x10] sm:$0xff]
        %v469 = vld [vmem:[%s465 + $0x18] sm:$0xff]
        %v470 = vld [vmem:[%s465 + $0x20] sm:$0xff]
        %v471 = vld [vmem:[%s465 + $0x28] sm:$0xff]
        %v472 = vld [vmem:[%s465 + $0x30] sm:$0xff]
        %v473 = vld [vmem:[%s465 + $0x38] sm:$0xff]
        %v474 = vld [vmem:[%s465 + $0x40] sm:$0xff]
        %v475 = vld [vmem:[%s465 + $0x48] sm:$0xff]
        %v476 = vld [vmem:[%s465 + $0x50] sm:$0xff]
        %v477 = vld [vmem:[%s465 + $0x58] sm:$0xff]
        %v478 = vld [vmem:[%s465 + $0x60] sm:$0xff]
        %v479 = vld [vmem:[%s465 + $0x68] sm:$0xff]
        %v480 = vld [vmem:[%s465 + $0x70] sm:$0xff]
        %v481 = vld [vmem:[%s465 + $0x78] sm:$0xff]
        %s482 = scalar_lea.vmem %s5, %s33
        %v483 = vld [vmem:[%s482] sm:$0x1]
        %s484 = scalar_lea.vmem [#allocation7], %s464
        %v485 = vld [vmem:[%s484] sm:$0xff]
        %v486 = vld [vmem:[%s484 + $0x8] sm:$0xff]
        %v487 = vld [vmem:[%s484 + $0x10] sm:$0xff]
        %v488 = vld [vmem:[%s484 + $0x18] sm:$0xff]
        %v489 = vld [vmem:[%s484 + $0x20] sm:$0xff]
        %v490 = vld [vmem:[%s484 + $0x28] sm:$0xff]
        %v491 = vld [vmem:[%s484 + $0x30] sm:$0xff]
        %v492 = vld [vmem:[%s484 + $0x38] sm:$0xff]
        %v493 = vld [vmem:[%s484 + $0x40] sm:$0xff]
        %v494 = vld [vmem:[%s484 + $0x48] sm:$0xff]
        %v495 = vld [vmem:[%s484 + $0x50] sm:$0xff]
        %v496 = vld [vmem:[%s484 + $0x58] sm:$0xff]
        %v497 = vld [vmem:[%s484 + $0x60] sm:$0xff]
        %v498 = vld [vmem:[%s484 + $0x68] sm:$0xff]
        %v499 = vld [vmem:[%s484 + $0x70] sm:$0xff]
        %v500 = vld [vmem:[%s484 + $0x78] sm:$0xff]
        %s501 = scalar_lea.vmem %s7, %s33
        %v502 = vld [vmem:[%s501] sm:$0x1]
        %v503 = vld [vmem:[%s436] sm:$0xff]
        %v504 = vld [vmem:[%s443] sm:$0xff]
        %v505 = vadd.f32 %v503, %v504
        %v506 = vld [vmem:[%s450] sm:$0x1]
        %v508 = vlaneseq
        %v509 = vshrl.u32 %v508, 7
        %v510 = vsub.s32 0, %v509
        %v511 = vrot.slane %v506, %v510
        %v513 = vadd.f32 %v505, %v511
        %v515 = vlaneseq
        %v516 = vshrl.u32 %v515, 7
        %v517 = vsub.s32 0, %v516
        %v518 = vrot.slane %v483, %v517
        %520 = vmatprep.subr.mxu0 0.0
        %521 = vmatpush1.msra.mxu0 %v466
        %522 = vmatprep.subr.mxu0 0.0
        %523 = vmatpush1.msra.mxu0 %v467
        %524 = vmatprep.subr.mxu0 0.0
        %525 = vmatpush1.msra.mxu0 %v468
        %526 = vmatprep.subr.mxu0 0.0
        %527 = vmatpush1.msra.mxu0 %v469
        %528 = vmatprep.subr.mxu0 0.0
        %529 = vmatpush1.msra.mxu0 %v470
        %530 = vmatprep.subr.mxu0 0.0
        %531 = vmatpush1.msra.mxu0 %v471
        %532 = vmatprep.subr.mxu0 0.0
        %533 = vmatpush1.msra.mxu0 %v472
        %534 = vmatprep.subr.mxu0 0.0
        %535 = vmatpush1.msra.mxu0 %v473
        %536 = vmatprep.subr.mxu0 0.0
        %537 = vmatpush1.msra.mxu0 %v474
        %538 = vmatprep.subr.mxu0 0.0
        %539 = vmatpush1.msra.mxu0 %v475
        %540 = vmatprep.subr.mxu0 0.0
        %541 = vmatpush1.msra.mxu0 %v476
        %542 = vmatprep.subr.mxu0 0.0
        %543 = vmatpush1.msra.mxu0 %v477
        %544 = vmatprep.subr.mxu0 0.0
        %545 = vmatpush1.msra.mxu0 %v478
        %546 = vmatprep.subr.mxu0 0.0
        %547 = vmatpush1.msra.mxu0 %v479
        %548 = vmatprep.subr.mxu0 0.0
        %549 = vmatpush1.msra.mxu0 %v480
        %550 = vmatprep.subr.mxu0 0.0
        %551 = vmatpush1.msra.mxu0 %v481
        %552 = vmatprep.subr.mxu0 0.0
        %553 = vmatpush1.msra.mxu0 0.0
        %554 = vmatprep.subr.mxu0 0.0
        %555 = vmatpush1.msra.mxu0 0.0
        %556 = vmatprep.subr.mxu0 0.0
        %557 = vmatpush1.msra.mxu0 0.0
        %558 = vmatprep.subr.mxu0 0.0
        %559 = vmatpush1.msra.mxu0 0.0
        %560 = vmatprep.subr.mxu0 0.0
        %561 = vmatpush1.msra.mxu0 0.0
        %562 = vmatprep.subr.mxu0 0.0
        %563 = vmatpush1.msra.mxu0 0.0
        %564 = vmatprep.subr.mxu0 0.0
        %565 = vmatpush1.msra.mxu0 0.0
        %566 = vmatprep.subr.mxu0 0.0
        %567 = vmatpush1.msra.mxu0 0.0
        %568 = vmatprep.subr.mxu0 0.0
        %569 = vmatpush1.msra.mxu0 0.0
        %570 = vmatprep.subr.mxu0 0.0
        %571 = vmatpush1.msra.mxu0 0.0
        %572 = vmatprep.subr.mxu0 0.0
        %573 = vmatpush1.msra.mxu0 0.0
        %574 = vmatprep.subr.mxu0 0.0
        %575 = vmatpush1.msra.mxu0 0.0
        %576 = vmatprep.subr.mxu0 0.0
        %577 = vmatpush1.msra.mxu0 0.0
        %578 = vmatprep.subr.mxu0 0.0
        %579 = vmatpush1.msra.mxu0 0.0
        %580 = vmatprep.subr.mxu0 0.0
        %581 = vmatpush1.msra.mxu0 0.0
        %582 = vmatprep.subr.mxu0 0.0
        %583 = vmatpush1.msra.mxu0 0.0
        %584 = vmatprep.mubr.f32.mxu0 0.0
        %585 = vmatmul.mubr.f32.gmra.mrb[0].mxu0 %v513
        %v586 = vpop.f32.mrb[0].mxu0
        %v587 = vadd.f32 %v518, %v586
        %v588 = vpop.f32.mrb[0].mxu0
        %589 = vdwg.mxu0
        %v590 = vmax.f32 %v587, 0.0
        %v592 = vlaneseq
        %v593 = vshrl.u32 %v592, 7
        %v594 = vsub.s32 0, %v593
        %v595 = vrot.slane %v502, %v594
        %597 = vmatprep.subr.mxu0 0.0
        %598 = vmatpush1.msra.mxu0 %v485
        %599 = vmatprep.subr.mxu0 0.0
        %600 = vmatpush1.msra.mxu0 %v486
        %601 = vmatprep.subr.mxu0 0.0
        %602 = vmatpush1.msra.mxu0 %v487
        %603 = vmatprep.subr.mxu0 0.0
        %604 = vmatpush1.msra.mxu0 %v488
        %605 = vmatprep.subr.mxu0 0.0
        %606 = vmatpush1.msra.mxu0 %v489
        %607 = vmatprep.subr.mxu0 0.0
        %608 = vmatpush1.msra.mxu0 %v490
        %609 = vmatprep.subr.mxu0 0.0
        %610 = vmatpush1.msra.mxu0 %v491
        %611 = vmatprep.subr.mxu0 0.0
        %612 = vmatpush1.msra.mxu0 %v492
        %613 = vmatprep.subr.mxu0 0.0
        %614 = vmatpush1.msra.mxu0 %v493
        %615 = vmatprep.subr.mxu0 0.0
        %616 = vmatpush1.msra.mxu0 %v494
        %617 = vmatprep.subr.mxu0 0.0
        %618 = vmatpush1.msra.mxu0 %v495
        %619 = vmatprep.subr.mxu0 0.0
        %620 = vmatpush1.msra.mxu0 %v496
        %621 = vmatprep.subr.mxu0 0.0
        %622 = vmatpush1.msra.mxu0 %v497
        %623 = vmatprep.subr.mxu0 0.0
        %624 = vmatpush1.msra.mxu0 %v498
        %625 = vmatprep.subr.mxu0 0.0
        %626 = vmatpush1.msra.mxu0 %v499
        %627 = vmatprep.subr.mxu0 0.0
        %628 = vmatpush1.msra.mxu0 %v500
        %629 = vmatprep.subr.mxu0 0.0
        %630 = vmatpush1.msra.mxu0 0.0
        %631 = vmatprep.subr.mxu0 0.0
        %632 = vmatpush1.msra.mxu0 0.0
        %633 = vmatprep.subr.mxu0 0.0
        %634 = vmatpush1.msra.mxu0 0.0
        %635 = vmatprep.subr.mxu0 0.0
        %636 = vmatpush1.msra.mxu0 0.0
        %637 = vmatprep.subr.mxu0 0.0
        %638 = vmatpush1.msra.mxu0 0.0
        %639 = vmatprep.subr.mxu0 0.0
        %640 = vmatpush1.msra.mxu0 0.0
        %641 = vmatprep.subr.mxu0 0.0
        %642 = vmatpush1.msra.mxu0 0.0
        %643 = vmatprep.subr.mxu0 0.0
        %644 = vmatpush1.msra.mxu0 0.0
        %645 = vmatprep.subr.mxu0 0.0
        %646 = vmatpush1.msra.mxu0 0.0
        %647 = vmatprep.subr.mxu0 0.0
        %648 = vmatpush1.msra.mxu0 0.0
        %649 = vmatprep.subr.mxu0 0.0
        %650 = vmatpush1.msra.mxu0 0.0
        %651 = vmatprep.subr.mxu0 0.0
        %652 = vmatpush1.msra.mxu0 0.0
        %653 = vmatprep.subr.mxu0 0.0
        %654 = vmatpush1.msra.mxu0 0.0
        %655 = vmatprep.subr.mxu0 0.0
        %656 = vmatpush1.msra.mxu0 0.0
        %657 = vmatprep.subr.mxu0 0.0
        %658 = vmatpush1.msra.mxu0 0.0
        %659 = vmatprep.subr.mxu0 0.0
        %660 = vmatpush1.msra.mxu0 0.0
        %661 = vmatprep.mubr.f32.mxu0 0.0
        %662 = vmatmul.mubr.f32.gmra.mrb[0].mxu0 %v590
        %v663 = vpop.f32.mrb[0].mxu0
        %v664 = vadd.f32 %v595, %v663
        %v665 = vpop.f32.mrb[0].mxu0
        %666 = vdwg.mxu0
        %v667 = vld [vmem:[%s457] sm:$0xff]
        %669 = vset.pattern.permute.xlu0 0
        %670 = vperm.xlu0 %669, %v667
        %v671 = vpop.permute.xlu0 %670
        %v673 = vmul.f32 %v664, %v671
        %v674 = vadd.f32 %v503, %v673
        %675 = vst [vmem:[%s436] sm:$0xff] %v674
        %s676 = sand.u32 %s251, 1
        %s677 = scalar_lea.sflag [#allocation4], %s676
        %s678 = sand.u32 %s251, 1
        %s679 = smul.addr %s678, 8
        %s680 = scalar_lea.vmem [#allocation8], %s679
        // Predicated region
        $region69: #{tpu_custom_call.1} parent=51 // pred_check
          %p681 = pneg %p261
        $region70: #{tpu_custom_call.1} parent=51 // pred_check_branch
          %683 = sbr.rel (%p681) target = $region72
        $region71: #{tpu_custom_call.1} parent=51 // pred_region
          %s685 = ssub.s32 128, 128
          %686 = vsyncadd %s677, %s685
          %s687 = sadd.s32 %s32, %s31
          %s688 = smul.addr %s687, 128
          %s689 = scalar_lea.hbm %s8, %s688
          %s691 = sshll.u32 %s680, 4
          %s692 = int_to_ptr.vmem [resolvable:$true] %s691
          %694 = dma.vmem_to_hbm [thread:$0]  %s692, 128, %s689, %s677
        $region72: #{tpu_custom_call.1} parent=51 // pred_fallthru
          _
      $region52: #{tpu_custom_call.1} parent=5 // pred_fallthru
        _
      %p695 = scmp.le.s32.totalorder 2, %s21
      // Predicated region
      $region73: #{tpu_custom_call.1} parent=5 // pred_check
        %p696 = pneg %p695
      $region74: #{tpu_custom_call.1} parent=5 // pred_check_branch
        %698 = sbr.rel (%p696) target = $region76
      $region75: #{tpu_custom_call.1} parent=5 // pred_region
        %s699 = ssub.s32 %s21, 2
        // Predicated region
        $region77: #{tpu_custom_call.1} parent=75 // pred_check
          %p700 = pneg %p267
        $region78: #{tpu_custom_call.1} parent=75 // pred_check_branch
          %702 = sbr.rel (%p700) target = $region80
        $region79: #{tpu_custom_call.1} parent=75 // pred_region
          %s703 = sand.u32 %s252, 1
          %s704 = scalar_lea.sflag [#allocation4], %s703
          %s705 = sand.u32 %s252, 1
          %s706 = smul.addr %s705, 8
          %s707 = scalar_lea.vmem [#allocation8], %s706
          %708 = dma.done %s704, 128
        $region80: #{tpu_custom_call.1} parent=75 // pred_fallthru
          _
      $region76: #{tpu_custom_call.1} parent=5 // pred_fallthru
        _
    $region6: #{tpu_custom_call.1} parent=1 // loop_footer
      %s25 = sadd.s32 1, %s21
    $region7: #{tpu_custom_call.1} parent=1 // loop_footer_branch
      %20 = sbr.rel target = $region3
    $region8: #{tpu_custom_call.1} parent=1 // loop_exit
      _
    %709 = vsyncpa [#allocation3], 1
    %s710 = scalar_lea.sflag [#allocation3], 1
    %711 = vsyncpa %s710, 1
    %712 = vsyncpa [#allocation6], 1
    %713 = vsyncpa [#allocation4], 1
    %s714 = scalar_lea.sflag [#allocation4], 1
    %715 = vsyncpa %s714, 1

</llo_original>
